<compile_context>
chip_gen: v7x
topology: tpu7x:2x2x1
jax: 0.10.0
libtpu: 0.0.40
codegen_flags: <defaults>
</compile_context>

<pallas_src>
import functools

import jax
import jax.numpy as jnp
from jax.experimental import pallas as pl
from jax.experimental.pallas import tpu as pltpu

NUM_HEADS = 8  # fixed by the module

_VMEM_LIMIT_BYTES = 32 * 1024 * 1024   # explicit scoped-VMEM request (safe v5e/v6e/v7x)
_VMEM_TILE_BUDGET = 24 * 1024 * 1024   # pipelined-footprint budget (headroom for scratch)


def _round_up(x, m):
    return ((x + m - 1) // m) * m


# --------------------------------------------------------------------------- #
# Kernel
# --------------------------------------------------------------------------- #
def _mha_kernel(x_ref, mem_ref, wqt_ref, wkvt_ref, bq_ref, bkv_ref, gate_ref, o_ref):
    """One batch tile: Q / fused-KV projections, singleton-key softmax, gate V."""
    x = x_ref[...]          # (tb, F)  compute dtype (bf16)
    m = mem_ref[...]        # (tb, F)

    # Projections: bf16 MXU inputs, f32 accumulation, f32 biases.
    q = jnp.dot(x, wqt_ref[...], preferred_element_type=jnp.float32) + bq_ref[...]
    kv = jnp.dot(m, wkvt_ref[...], preferred_element_type=jnp.float32) + bkv_ref[...]

    hidden = q.shape[-1]
    k = kv[:, :hidden]      # lane-aligned split whenever hidden % 128 == 0
    v = kv[:, hidden:]

    # Per-head scaled score broadcast back across each head's lanes in a single
    # matmul against the precomputed block-diagonal gate (scale folded in).
    # Intermediate stays lane-dense (tb, hidden); no (tb, 8) sparse vregs.
    t = jnp.dot(q * k, gate_ref[...], preferred_element_type=jnp.float32)

    # softmax over the length-1 key axis: exactly 1 for finite scores, NaN
    # propagates for non-finite ones (matches torch.softmax on a size-1 dim).
    attn = jnp.exp(t - t)

    o_ref[...] = (attn * v).astype(o_ref.dtype)


# --------------------------------------------------------------------------- #
# One-time parameter preparation (do NOT re-run per forward call)
# --------------------------------------------------------------------------- #
def prepare_mha_params(wq, bq, wk, bk, wv, bv, *, compute_dtype=jnp.bfloat16):
    """Transpose to (F, H), fuse K|V weights, build block-diagonal gate, cast."""
    H, F = wq.shape
    assert H % NUM_HEADS == 0, "hidden_dim must be divisible by num_heads"
    head_dim = H // NUM_HEADS

    wqt = wq.T.astype(compute_dtype)                                     # (F, H)
    wkvt = jnp.concatenate([wk.T, wv.T], axis=1).astype(compute_dtype)   # (F, 2H)
    bq2 = bq.reshape(1, H).astype(jnp.float32)
    bkv2 = jnp.concatenate([bk, bv]).reshape(1, 2 * H).astype(jnp.float32)

    head = jnp.arange(H) // head_dim
    gate = (head[:, None] == head[None, :]).astype(jnp.float32) * (head_dim ** -0.5)
    return wqt, wkvt, bq2, bkv2, gate


# --------------------------------------------------------------------------- #
# Tile selection
# --------------------------------------------------------------------------- #
def _choose_batch_tile(B, F, H, in_itemsize, out_itemsize,
                       budget=_VMEM_TILE_BUDGET, target_steps=4):
    def footprint(tb):
        acts = 2 * 2 * tb * F * in_itemsize                 # x, memory (double-buffered)
        outs = 2 * tb * H * out_itemsize                    # output (double-buffered)
        wgt = 2 * (3 * F * H * in_itemsize + 3 * H * 4 + H * H * 4)
        return acts + outs + wgt

    tb = 1024
    while tb > 8 and footprint(tb) > budget:
        tb //= 2
    # Keep >= target_steps grid steps for pipelining / dual-TC sharding (v7x),
    # but never shrink below a 256-row tile just to get more steps.
    while tb > 256 and pl.cdiv(B, tb) < target_steps:
        tb //= 2
    return min(tb, _round_up(B, 8))


# --------------------------------------------------------------------------- #
# Wrapper
# --------------------------------------------------------------------------- #
@functools.partial(jax.jit, static_argnames=("block_b",))
def multi_head_attention(x, memory, params, *, block_b=None):
    """Forward of MultiHeadAttention.

    x, memory : (B, F)                           (F == the module's seq_len/mem_len)
    params    : output of prepare_mha_params()
    returns   : (B, F, H // F)  == attended.transpose(1,2).view(B, seq_len, -1)
    """
    wqt, wkvt, bq2, bkv2, gate = params
    B, F = x.shape
    H = wqt.shape[1]
    assert H % NUM_HEADS == 0, "hidden_dim must be divisible by num_heads"
    assert H % F == 0, "final .view(B, seq_len, -1) requires hidden % seq == 0"

    compute_dtype = wqt.dtype
    out_dtype = x.dtype
    in_itemsize = jnp.dtype(compute_dtype).itemsize
    out_itemsize = jnp.dtype(out_dtype).itemsize

    if block_b is None:
        tb = _choose_batch_tile(B, F, H, in_itemsize, out_itemsize)
    else:
        tb = max(8, _round_up(int(block_b), 8))

    Bp = _round_up(B, tb)            # pad ragged batch instead of whole-batch block
    grid = (Bp // tb,)

    xc = x.astype(compute_dtype)
    mc = memory.astype(compute_dtype)
    if Bp != B:
        pad = ((0, Bp - B), (0, 0))
        xc = jnp.pad(xc, pad)
        mc = jnp.pad(mc, pad)

    act_spec = pl.BlockSpec((tb, F), lambda i: (i, 0))
    # Grid-invariant blocks (index_map constant). On v7x these could also use
    # pipeline_mode=pl.Buffered(1) to drop the redundant second buffer.
    wq_spec = pl.BlockSpec((F, H), lambda i: (0, 0))
    wkv_spec = pl.BlockSpec((F, 2 * H), lambda i: (0, 0))
    bq_spec = pl.BlockSpec((1, H), lambda i: (0, 0))
    bkv_spec = pl.BlockSpec((1, 2 * H), lambda i: (0, 0))
    gate_spec = pl.BlockSpec((H, H), lambda i: (0, 0))
    o_spec = pl.BlockSpec((tb, H), lambda i: (i, 0))

    cost = pl.CostEstimate(
        flops=2 * Bp * F * H            # Q projection
        + 2 * Bp * F * (2 * H)          # fused K|V projection
        + 2 * Bp * H * H                # block-diagonal gate matmul
        + 4 * Bp * H,                   # elementwise gating
        transcendentals=Bp * H,         # singleton softmax exp (lane-dense)
        bytes_accessed=(2 * Bp * F + 3 * F * H) * in_itemsize
        + (3 * H + H * H) * 4
        + Bp * H * out_itemsize,
    )

    out2d = pl.pallas_call(
        _mha_kernel,
        out_shape=jax.ShapeDtypeStruct((Bp, H), out_dtype),
        grid=grid,
        in_specs=[act_spec, act_spec, wq_spec, wkv_spec, bq_spec, bkv_spec, gate_spec],
        out_specs=o_spec,
        compiler_params=pltpu.CompilerParams(
            dimension_semantics=("parallel",),      # v7x: shard grid across 2 TCs
            vmem_limit_bytes=_VMEM_LIMIT_BYTES,
        ),
        cost_estimate=cost,
    )(xc, mc, wqt, wkvt, bq2, bkv2, gate)

    if Bp != B:
        out2d = out2d[:B]
    # attended.transpose(1,2).contiguous().view(B, seq_len, -1): per-batch
    # sequence length is 1, so this is a free reshape of (B, H).
    return out2d.reshape(B, F, H // F)


# --------------------------------------------------------------------------- #
# Pure-JAX reference mirroring the PyTorch forward exactly
# --------------------------------------------------------------------------- #
def multi_head_attention_ref(x, memory, wq, bq, wk, bk, wv, bv):
    with jax.default_matmul_precision("float32"):
        B, F = x.shape
        H = wq.shape[0]
        hd = H // NUM_HEADS
        q = (x @ wq.T + bq).reshape(B, 1, NUM_HEADS, hd).transpose(0, 2, 1, 3)
        k = (memory @ wk.T + bk).reshape(B, 1, NUM_HEADS, hd).transpose(0, 2, 1, 3)
        v = (memory @ wv.T + bv).reshape(B, 1, NUM_HEADS, hd).transpose(0, 2, 1, 3)
        attn = jnp.matmul(q, jnp.swapaxes(k, -2, -1)) / (hd ** 0.5)
        attn = jax.nn.softmax(attn, axis=-1)          # softmax over size-1 dim
        attended = jnp.matmul(attn, v).transpose(0, 2, 1, 3).reshape(B, F, -1)
        return attended


# --------------------------------------------------------------------------- #
# Test
# --------------------------------------------------------------------------- #
def _run_case(name, B, F, H, block_b, key):
    kx, km, kq, kk, kv, kbq, kbk, kbv = jax.random.split(key, 8)
    x = jax.random.normal(kx, (B, F), dtype=jnp.float32)
    memory = jax.random.normal(km, (B, F), dtype=jnp.float32)

    s = 1.0 / (F ** 0.5)   # nn.Linear default init range
    wq = jax.random.uniform(kq, (H, F), jnp.float32, -s, s)
    wk = jax.random.uniform(kk, (H, F), jnp.float32, -s, s)
    wv = jax.random.uniform(kv, (H, F), jnp.float32, -s, s)
    bq = jax.random.uniform(kbq, (H,), jnp.float32, -s, s)
    bk = jax.random.uniform(kbk, (H,), jnp.float32, -s, s)
    bv = jax.random.uniform(kbv, (H,), jnp.float32, -s, s)

    params = prepare_mha_params(wq, bq, wk, bk, wv, bv)   # one-time prep
    out = multi_head_attention(x, memory, params, block_b=block_b)
    out = jax.block_until_ready(out)

    ref = multi_head_attention_ref(x, memory, wq, bq, wk, bk, wv, bv)
    assert out.shape == (B, F, H // F), (name, out.shape)
    max_err = float(jnp.max(jnp.abs(out.astype(jnp.float32) - ref)))
    # Tolerance covers the bf16 cast of activations/weights at the kernel boundary.
    assert max_err < 2e-2, f"{name}: max abs err {max_err}"


if __name__ == "__main__":
    key = jax.random.PRNGKey(0)
    k1, k2 = jax.random.split(key)

    # Tiny module shape: exercises ragged-batch padding (20 % 8 != 0), a
    # multi-step grid, and the sub-128-lane (H = 32) output path.
    _run_case("small", B=20, F=16, H=32, block_b=8, key=k1)

    # Lane-aligned shape: exercises the auto tile picker (tb = 256, 4 grid
    # steps), the lane-aligned fused K|V split, and dense 128-multiple stores.
    _run_case("aligned", B=1024, F=128, H=256, block_b=None, key=k2)

    print("KERNEL_OK")
</pallas_src>

<mosaic_0001>
module attributes {stable_mosaic.version = 11 : i64} {
  func.func @_mha_kernel(%arg0: i32, %arg1: memref<8x16xbf16, #tpu.memory_space<vmem>>, %arg2: memref<8x16xbf16, #tpu.memory_space<vmem>>, %arg3: memref<16x32xbf16, #tpu.memory_space<vmem>>, %arg4: memref<16x64xbf16, #tpu.memory_space<vmem>>, %arg5: memref<1x32xf32, #tpu.memory_space<vmem>>, %arg6: memref<1x64xf32, #tpu.memory_space<vmem>>, %arg7: memref<32x32xf32, #tpu.memory_space<vmem>>, %arg8: memref<8x32xf32, #tpu.memory_space<vmem>>) attributes {dimension_semantics = [#tpu.dimension_semantics<parallel>], iteration_bounds = array<i64: 3>, scalar_prefetch = 0 : i64, scratch_operands = 0 : i64, tpu.core_type = #tpu.core_type<tc>, window_params = [{transform_indices = @transform_0, window_bounds = array<i64: 8, 16>}, {transform_indices = @transform_1, window_bounds = array<i64: 8, 16>}, {pipeline_mode = #tpu.pipeline_mode<synchronous>, transform_indices = @transform_2, window_bounds = array<i64: 16, 32>}, {pipeline_mode = #tpu.pipeline_mode<synchronous>, transform_indices = @transform_3, window_bounds = array<i64: 16, 64>}, {pipeline_mode = #tpu.pipeline_mode<synchronous>, transform_indices = @transform_4, window_bounds = array<i64: 1, 32>}, {pipeline_mode = #tpu.pipeline_mode<synchronous>, transform_indices = @transform_5, window_bounds = array<i64: 1, 64>}, {pipeline_mode = #tpu.pipeline_mode<synchronous>, transform_indices = @transform_6, window_bounds = array<i64: 32, 32>}, {transform_indices = @transform_7, window_bounds = array<i64: 8, 32>}]} {
    %c0 = arith.constant 0 : index
    %c0_0 = arith.constant 0 : index
    %0 = vector.load %arg1[%c0, %c0_0] : memref<8x16xbf16, #tpu.memory_space<vmem>>, vector<8x16xbf16>
    %c0_1 = arith.constant 0 : index
    %c0_2 = arith.constant 0 : index
    %1 = vector.load %arg2[%c0_1, %c0_2] : memref<8x16xbf16, #tpu.memory_space<vmem>>, vector<8x16xbf16>
    %c0_3 = arith.constant 0 : index
    %c0_4 = arith.constant 0 : index
    %2 = vector.load %arg3[%c0_3, %c0_4] : memref<16x32xbf16, #tpu.memory_space<vmem>>, vector<16x32xbf16>
    %cst = arith.constant dense<0.000000e+00> : vector<8x32xf32>
    %3 = tpu.matmul %0, %2, %cst {dimension_numbers = #tpu.dot_dimension_numbers<[1], [0], [0], [1], [0, 0, 1, 1], [], []>} : vector<8x16xbf16>, vector<16x32xbf16>, vector<8x32xf32> -> vector<8x32xf32>
    %c0_5 = arith.constant 0 : index
    %c0_6 = arith.constant 0 : index
    %4 = vector.load %arg5[%c0_5, %c0_6] : memref<1x32xf32, #tpu.memory_space<vmem>>, vector<1x32xf32>
    %5 = vector.broadcast %4 : vector<1x32xf32> to vector<8x32xf32>
    %6 = arith.addf %3, %5 : vector<8x32xf32>
    %c0_7 = arith.constant 0 : index
    %c0_8 = arith.constant 0 : index
    %7 = vector.load %arg4[%c0_7, %c0_8] : memref<16x64xbf16, #tpu.memory_space<vmem>>, vector<16x64xbf16>
    %cst_9 = arith.constant dense<0.000000e+00> : vector<8x64xf32>
    %8 = tpu.matmul %1, %7, %cst_9 {dimension_numbers = #tpu.dot_dimension_numbers<[1], [0], [0], [1], [0, 0, 1, 1], [], []>} : vector<8x16xbf16>, vector<16x64xbf16>, vector<8x64xf32> -> vector<8x64xf32>
    %c0_10 = arith.constant 0 : index
    %c0_11 = arith.constant 0 : index
    %9 = vector.load %arg6[%c0_10, %c0_11] : memref<1x64xf32, #tpu.memory_space<vmem>>, vector<1x64xf32>
    %10 = vector.broadcast %9 : vector<1x64xf32> to vector<8x64xf32>
    %11 = arith.addf %8, %10 : vector<8x64xf32>
    %12 = vector.extract_strided_slice %11 {offsets = [0, 0], sizes = [8, 32], strides = [1, 1]} : vector<8x64xf32> to vector<8x32xf32>
    %13 = vector.extract_strided_slice %11 {offsets = [0, 32], sizes = [8, 32], strides = [1, 1]} : vector<8x64xf32> to vector<8x32xf32>
    %14 = arith.mulf %6, %12 : vector<8x32xf32>
    %c0_12 = arith.constant 0 : index
    %c0_13 = arith.constant 0 : index
    %15 = vector.load %arg7[%c0_12, %c0_13] : memref<32x32xf32, #tpu.memory_space<vmem>>, vector<32x32xf32>
    %cst_14 = arith.constant dense<0.000000e+00> : vector<8x32xf32>
    %16 = tpu.matmul %14, %15, %cst_14 {dimension_numbers = #tpu.dot_dimension_numbers<[1], [0], [0], [1], [0, 0, 1, 1], [], []>} : vector<8x32xf32>, vector<32x32xf32>, vector<8x32xf32> -> vector<8x32xf32>
    %17 = arith.subf %16, %16 : vector<8x32xf32>
    %18 = math.exp %17 : vector<8x32xf32>
    %19 = arith.mulf %18, %13 : vector<8x32xf32>
    %c0_15 = arith.constant 0 : index
    %c0_16 = arith.constant 0 : index
    %20 = vector.load %arg8[%c0_15, %c0_16] : memref<8x32xf32, #tpu.memory_space<vmem>>, vector<8x32xf32>
    tpu.vector_store %arg8[%c0_15, %c0_16], %19 {strides = array<i32>} : memref<8x32xf32, #tpu.memory_space<vmem>>, vector<8x32xf32>,
    return
  }
  func.func @transform_0(%arg0: i32) -> (i32, i32) {
    %c0_i32 = arith.constant 0 : i32
    %c0_i32_0 = arith.constant 0 : i32
    return %arg0, %c0_i32 : i32, i32
  }
  func.func @transform_1(%arg0: i32) -> (i32, i32) {
    %c0_i32 = arith.constant 0 : i32
    %c0_i32_0 = arith.constant 0 : i32
    return %arg0, %c0_i32 : i32, i32
  }
  func.func @transform_2(%arg0: i32) -> (i32, i32) {
    %c0_i32 = arith.constant 0 : i32
    %c0_i32_0 = arith.constant 0 : i32
    %c0_i32_1 = arith.constant 0 : i32
    return %c0_i32, %c0_i32_0 : i32, i32
  }
  func.func @transform_3(%arg0: i32) -> (i32, i32) {
    %c0_i32 = arith.constant 0 : i32
    %c0_i32_0 = arith.constant 0 : i32
    %c0_i32_1 = arith.constant 0 : i32
    return %c0_i32, %c0_i32_0 : i32, i32
  }
  func.func @transform_4(%arg0: i32) -> (i32, i32) {
    %c0_i32 = arith.constant 0 : i32
    %c0_i32_0 = arith.constant 0 : i32
    %c0_i32_1 = arith.constant 0 : i32
    return %c0_i32, %c0_i32_0 : i32, i32
  }
  func.func @transform_5(%arg0: i32) -> (i32, i32) {
    %c0_i32 = arith.constant 0 : i32
    %c0_i32_0 = arith.constant 0 : i32
    %c0_i32_1 = arith.constant 0 : i32
    return %c0_i32, %c0_i32_0 : i32, i32
  }
  func.func @transform_6(%arg0: i32) -> (i32, i32) {
    %c0_i32 = arith.constant 0 : i32
    %c0_i32_0 = arith.constant 0 : i32
    %c0_i32_1 = arith.constant 0 : i32
    return %c0_i32, %c0_i32_0 : i32, i32
  }
  func.func @transform_7(%arg0: i32) -> (i32, i32) {
    %c0_i32 = arith.constant 0 : i32
    %c0_i32_0 = arith.constant 0 : i32
    return %arg0, %c0_i32 : i32, i32
  }
}

</mosaic_0001>

<llo_original>
// kernel: multi_head_attention.1
$region0: #{multi_head_attention.1}
  #allocation0 [shape = 'u32[]', space=smem, size = 0x4, offset = 0x4, fixed_abs, tag = 'smem constant byte address 0x4 - core index']
  #allocation1 [shape = 'u32[144,128]{1,0:T(1,128)}', space=vmem, size = 0x12000, scoped, tag = 'internal scratch']
  %s0 = inlined_call_operand.vmem [shape: bf16[24,16], index: 0, kind: input, shape index: {}]
  %s1 = inlined_call_operand.vmem [shape: bf16[24,16], index: 1, kind: input, shape index: {}]
  %s2 = inlined_call_operand.vmem [shape: bf16[16,32], index: 2, kind: input, shape index: {}]
  %s3 = inlined_call_operand.vmem [shape: bf16[16,64], index: 3, kind: input, shape index: {}]
  %s4 = inlined_call_operand.vmem [shape: f32[1,32], index: 4, kind: input, shape index: {}]
  %s5 = inlined_call_operand.vmem [shape: f32[1,64], index: 5, kind: input, shape index: {}]
  %s6 = inlined_call_operand.vmem [shape: f32[32,32], index: 6, kind: input, shape index: {}]
  %s7 = inlined_call_operand.vmem [shape: f32[24,32], index: 7, kind: output, shape index: {}]
  %s8 = sld [smem:[#allocation0]]
  $region61: #{multi_head_attention.1} parent=0
    _
  %s10 = ssub.s32 1, %s8
  %s11 = scalar_select 0, %s10, %s8
  loop: start=0, step=1, limit=5
  $region2: #{multi_head_attention.1} parent=0 // loop_pre_header
    _
  $region3: #{multi_head_attention.1} parent=0 // loop_header
    %s13 = sphi 0, %s17
    %p14 = scmp.ge.s32.totalorder %s13, 5
    %s23 = sphi 0, %s25
    %s26 = sphi 0, %s23
    %s27 = sphi 0, %s26
    %s43 = sphi 0, %s27
    %s49 = sphi 0, %s51
    %s52 = sphi 0, %s49
    %s53 = sphi 0, %s52
    %s69 = sphi 0, %s53
    %s73 = sphi 0, %s73
    %s75 = sphi 0, %s73
    %s76 = sphi 0, %s75
    %s90 = sphi 0, %s76
    %s94 = sphi 0, %s94
    %s96 = sphi 0, %s94
    %s97 = sphi 0, %s96
    %s111 = sphi 0, %s97
    %s115 = sphi 0, %s115
    %s117 = sphi 0, %s115
    %s118 = sphi 0, %s117
    %s132 = sphi 0, %s118
    %s136 = sphi 0, %s136
    %s138 = sphi 0, %s136
    %s139 = sphi 0, %s138
    %s153 = sphi 0, %s139
    %s157 = sphi 0, %s157
    %s159 = sphi 0, %s157
    %s160 = sphi 0, %s159
    %s174 = sphi 0, %s160
    %s180 = sphi 0, %s182
    %s183 = sphi 0, %s180
    %s184 = sphi 0, %s183
    %s200 = sphi 0, %s184
  $region4: #{multi_head_attention.1} parent=0 // loop_header_branch
    %16 = sbr.rel (%p14) target = $region8
  $region5: #{multi_head_attention.1} parent=0 // loop_body
    %s18 = ssub.s32 %s13, 1
    %s19 = ssub.s32 %s13, 2
    %s20 = sadd.s32 %s13, 1
    %s21 = ssub.s32 %s13, %s20
    %p22 = scmp.eq.s32.totalorder %s21, 0
    %s24 = sadd.s32 %s23, 1
    %s25 = scalar_select %p22, %s23, %s24
    %p28 = pneg %p22
    %p29 = scmp.eq.s32.totalorder %s13, 2
    %p30 = por %p28, %p29
    %p31 = scmp.ne.s32.totalorder %s23, %s26
    %p32 = scmp.eq.s32.totalorder %s13, 0
    %p33 = por %p31, %p32
    %p34 = scmp.ne.s32.totalorder %s23, %s26
    %p35 = scmp.eq.s32.totalorder %s18, 2
    %p36 = por %p34, %p35
    %p37 = scmp.ne.s32.totalorder %s26, %s27
    %p38 = scmp.eq.s32.totalorder %s18, 0
    %p39 = por %p37, %p38
    %p40 = scmp.ne.s32.totalorder %s26, %s27
    %p41 = scmp.eq.s32.totalorder %s19, 2
    %p42 = por %p40, %p41
    %p44 = scmp.ne.s32.totalorder %s27, %s43
    %p45 = scmp.eq.s32.totalorder %s19, 0
    %p46 = por %p44, %p45
    %s47 = ssub.s32 %s13, %s20
    %p48 = scmp.eq.s32.totalorder %s47, 0
    %s50 = sadd.s32 %s49, 1
    %s51 = scalar_select %p48, %s49, %s50
    %p54 = pneg %p48
    %p55 = scmp.eq.s32.totalorder %s13, 2
    %p56 = por %p54, %p55
    %p57 = scmp.ne.s32.totalorder %s49, %s52
    %p58 = scmp.eq.s32.totalorder %s13, 0
    %p59 = por %p57, %p58
    %p60 = scmp.ne.s32.totalorder %s49, %s52
    %p61 = scmp.eq.s32.totalorder %s18, 2
    %p62 = por %p60, %p61
    %p63 = scmp.ne.s32.totalorder %s52, %s53
    %p64 = scmp.eq.s32.totalorder %s18, 0
    %p65 = por %p63, %p64
    %p66 = scmp.ne.s32.totalorder %s52, %s53
    %p67 = scmp.eq.s32.totalorder %s19, 2
    %p68 = por %p66, %p67
    %p70 = scmp.ne.s32.totalorder %s53, %s69
    %p71 = scmp.eq.s32.totalorder %s19, 0
    %p72 = por %p70, %p71
    %s74 = sadd.s32 %s73, 1
    %p77 = scmp.eq.s32.totalorder %s13, 2
    %p78 = scmp.ne.s32.totalorder %s73, %s75
    %p79 = scmp.eq.s32.totalorder %s13, 0
    %p80 = por %p78, %p79
    %p81 = scmp.ne.s32.totalorder %s73, %s75
    %p82 = scmp.eq.s32.totalorder %s18, 2
    %p83 = por %p81, %p82
    %p84 = scmp.ne.s32.totalorder %s75, %s76
    %p85 = scmp.eq.s32.totalorder %s18, 0
    %p86 = por %p84, %p85
    %p87 = scmp.ne.s32.totalorder %s75, %s76
    %p88 = scmp.eq.s32.totalorder %s19, 2
    %p89 = por %p87, %p88
    %p91 = scmp.ne.s32.totalorder %s76, %s90
    %p92 = scmp.eq.s32.totalorder %s19, 0
    %p93 = por %p91, %p92
    %s95 = sadd.s32 %s94, 1
    %p98 = scmp.eq.s32.totalorder %s13, 2
    %p99 = scmp.ne.s32.totalorder %s94, %s96
    %p100 = scmp.eq.s32.totalorder %s13, 0
    %p101 = por %p99, %p100
    %p102 = scmp.ne.s32.totalorder %s94, %s96
    %p103 = scmp.eq.s32.totalorder %s18, 2
    %p104 = por %p102, %p103
    %p105 = scmp.ne.s32.totalorder %s96, %s97
    %p106 = scmp.eq.s32.totalorder %s18, 0
    %p107 = por %p105, %p106
    %p108 = scmp.ne.s32.totalorder %s96, %s97
    %p109 = scmp.eq.s32.totalorder %s19, 2
    %p110 = por %p108, %p109
    %p112 = scmp.ne.s32.totalorder %s97, %s111
    %p113 = scmp.eq.s32.totalorder %s19, 0
    %p114 = por %p112, %p113
    %s116 = sadd.s32 %s115, 1
    %p119 = scmp.eq.s32.totalorder %s13, 2
    %p120 = scmp.ne.s32.totalorder %s115, %s117
    %p121 = scmp.eq.s32.totalorder %s13, 0
    %p122 = por %p120, %p121
    %p123 = scmp.ne.s32.totalorder %s115, %s117
    %p124 = scmp.eq.s32.totalorder %s18, 2
    %p125 = por %p123, %p124
    %p126 = scmp.ne.s32.totalorder %s117, %s118
    %p127 = scmp.eq.s32.totalorder %s18, 0
    %p128 = por %p126, %p127
    %p129 = scmp.ne.s32.totalorder %s117, %s118
    %p130 = scmp.eq.s32.totalorder %s19, 2
    %p131 = por %p129, %p130
    %p133 = scmp.ne.s32.totalorder %s118, %s132
    %p134 = scmp.eq.s32.totalorder %s19, 0
    %p135 = por %p133, %p134
    %s137 = sadd.s32 %s136, 1
    %p140 = scmp.eq.s32.totalorder %s13, 2
    %p141 = scmp.ne.s32.totalorder %s136, %s138
    %p142 = scmp.eq.s32.totalorder %s13, 0
    %p143 = por %p141, %p142
    %p144 = scmp.ne.s32.totalorder %s136, %s138
    %p145 = scmp.eq.s32.totalorder %s18, 2
    %p146 = por %p144, %p145
    %p147 = scmp.ne.s32.totalorder %s138, %s139
    %p148 = scmp.eq.s32.totalorder %s18, 0
    %p149 = por %p147, %p148
    %p150 = scmp.ne.s32.totalorder %s138, %s139
    %p151 = scmp.eq.s32.totalorder %s19, 2
    %p152 = por %p150, %p151
    %p154 = scmp.ne.s32.totalorder %s139, %s153
    %p155 = scmp.eq.s32.totalorder %s19, 0
    %p156 = por %p154, %p155
    %s158 = sadd.s32 %s157, 1
    %p161 = scmp.eq.s32.totalorder %s13, 2
    %p162 = scmp.ne.s32.totalorder %s157, %s159
    %p163 = scmp.eq.s32.totalorder %s13, 0
    %p164 = por %p162, %p163
    %p165 = scmp.ne.s32.totalorder %s157, %s159
    %p166 = scmp.eq.s32.totalorder %s18, 2
    %p167 = por %p165, %p166
    %p168 = scmp.ne.s32.totalorder %s159, %s160
    %p169 = scmp.eq.s32.totalorder %s18, 0
    %p170 = por %p168, %p169
    %p171 = scmp.ne.s32.totalorder %s159, %s160
    %p172 = scmp.eq.s32.totalorder %s19, 2
    %p173 = por %p171, %p172
    %p175 = scmp.ne.s32.totalorder %s160, %s174
    %p176 = scmp.eq.s32.totalorder %s19, 0
    %p177 = por %p175, %p176
    %s178 = ssub.s32 %s13, %s20
    %p179 = scmp.eq.s32.totalorder %s178, 0
    %s181 = sadd.s32 %s180, 1
    %s182 = scalar_select %p179, %s180, %s181
    %p185 = pneg %p179
    %p186 = scmp.eq.s32.totalorder %s13, 2
    %p187 = por %p185, %p186
    %p188 = scmp.ne.s32.totalorder %s180, %s183
    %p189 = scmp.eq.s32.totalorder %s13, 0
    %p190 = por %p188, %p189
    %p191 = scmp.ne.s32.totalorder %s180, %s183
    %p192 = scmp.eq.s32.totalorder %s18, 2
    %p193 = por %p191, %p192
    %p194 = scmp.ne.s32.totalorder %s183, %s184
    %p195 = scmp.eq.s32.totalorder %s18, 0
    %p196 = por %p194, %p195
    %p197 = scmp.ne.s32.totalorder %s183, %s184
    %p198 = scmp.eq.s32.totalorder %s19, 2
    %p199 = por %p197, %p198
    %p201 = scmp.ne.s32.totalorder %s184, %s200
    %p202 = scmp.eq.s32.totalorder %s19, 0
    %p203 = por %p201, %p202
    %p204 = scmp.le.s32.totalorder 1, %s13
    %p205 = scmp.lt.s32.totalorder %s13, 4
    %p206 = pnand %p204, %p205
    %p207 = pneg %p206
    // Predicated region
    $region9: #{multi_head_attention.1} parent=5 // pred_check
      _
    $region10: #{multi_head_attention.1} parent=5 // pred_check_branch
      %209 = sbr.rel (%p206) target = $region12
    $region11: #{multi_head_attention.1} parent=5 // pred_region
      %s210 = ssub.s32 %s13, 1
      // Predicated region
      $region13: #{multi_head_attention.1} parent=11 // pred_check
        %p211 = pneg %p86
      $region14: #{multi_head_attention.1} parent=11 // pred_check_branch
        %213 = sbr.rel (%p211) target = $region16
      $region15: #{multi_head_attention.1} parent=11 // pred_region
        _
      $region16: #{multi_head_attention.1} parent=11 // pred_fallthru
        _
      // Predicated region
      $region17: #{multi_head_attention.1} parent=11 // pred_check
        %p214 = pneg %p107
      $region18: #{multi_head_attention.1} parent=11 // pred_check_branch
        %216 = sbr.rel (%p214) target = $region20
      $region19: #{multi_head_attention.1} parent=11 // pred_region
        _
      $region20: #{multi_head_attention.1} parent=11 // pred_fallthru
        _
      // Predicated region
      $region21: #{multi_head_attention.1} parent=11 // pred_check
        %p217 = pneg %p128
      $region22: #{multi_head_attention.1} parent=11 // pred_check_branch
        %219 = sbr.rel (%p217) target = $region24
      $region23: #{multi_head_attention.1} parent=11 // pred_region
        _
      $region24: #{multi_head_attention.1} parent=11 // pred_fallthru
        _
      // Predicated region
      $region25: #{multi_head_attention.1} parent=11 // pred_check
        %p220 = pneg %p149
      $region26: #{multi_head_attention.1} parent=11 // pred_check_branch
        %222 = sbr.rel (%p220) target = $region28
      $region27: #{multi_head_attention.1} parent=11 // pred_region
        _
      $region28: #{multi_head_attention.1} parent=11 // pred_fallthru
        _
      // Predicated region
      $region29: #{multi_head_attention.1} parent=11 // pred_check
        %p223 = pneg %p170
      $region30: #{multi_head_attention.1} parent=11 // pred_check_branch
        %225 = sbr.rel (%p223) target = $region32
      $region31: #{multi_head_attention.1} parent=11 // pred_region
        _
      $region32: #{multi_head_attention.1} parent=11 // pred_fallthru
        _
    $region12: #{multi_head_attention.1} parent=5 // pred_fallthru
      _
    %p226 = scmp.lt.s32.totalorder %s13, 3
    // Predicated region
    $region33: #{multi_head_attention.1} parent=5 // pred_check
      %p227 = pneg %p226
    $region34: #{multi_head_attention.1} parent=5 // pred_check_branch
      %229 = sbr.rel (%p227) target = $region36
    $region35: #{multi_head_attention.1} parent=5 // pred_region
      // Predicated region
      $region37: #{multi_head_attention.1} parent=35 // pred_check
        %p230 = pneg %p33
      $region38: #{multi_head_attention.1} parent=35 // pred_check_branch
        %232 = sbr.rel (%p230) target = $region40
      $region39: #{multi_head_attention.1} parent=35 // pred_region
        %p233 = scmp.lt.s32.totalorder %s13, 2
        %s234 = scalar_select %p233, %s13, 2
        %s235 = smul.addr %s234, 4
        %s236 = scalar_lea.vmem %s0, %s235
      $region40: #{multi_head_attention.1} parent=35 // pred_fallthru
        _
      // Predicated region
      $region41: #{multi_head_attention.1} parent=35 // pred_check
        %p237 = pneg %p59
      $region42: #{multi_head_attention.1} parent=35 // pred_check_branch
        %239 = sbr.rel (%p237) target = $region44
      $region43: #{multi_head_attention.1} parent=35 // pred_region
        %p240 = scmp.lt.s32.totalorder %s13, 2
        %s241 = scalar_select %p240, %s13, 2
        %s242 = smul.addr %s241, 4
        %s243 = scalar_lea.vmem %s1, %s242
      $region44: #{multi_head_attention.1} parent=35 // pred_fallthru
        _
    $region36: #{multi_head_attention.1} parent=5 // pred_fallthru
      _
    %p244 = scmp.le.s32.totalorder 1, %s13
    %p245 = scmp.lt.s32.totalorder %s13, 4
    %p246 = pnand %p244, %p245
    %p247 = pneg %p246
    // Predicated region
    $region45: #{multi_head_attention.1} parent=5 // pred_check
      _
    $region46: #{multi_head_attention.1} parent=5 // pred_check_branch
      %249 = sbr.rel (%p246) target = $region48
    $region47: #{multi_head_attention.1} parent=5 // pred_region
      %s250 = ssub.s32 %s13, 1
      %p251 = scmp.lt.s32.totalorder %s18, 2
      %s252 = scalar_select %p251, %s18, 2
      %s253 = smul.addr %s252, 4
      %s254 = scalar_lea.vmem %s0, %s253
      %p255 = pneg %p39
      %p256 = pneg %p36
      %p257 = scmp.lt.s32.totalorder %s18, 2
      %s258 = scalar_select %p257, %s18, 2
      %s259 = smul.addr %s258, 4
      %s260 = scalar_lea.vmem %s1, %s259
      %p261 = pneg %p65
      %p262 = pneg %p62
      %p263 = pneg %p86
      %p264 = pneg %p83
      %p265 = pneg %p107
      %p266 = pneg %p104
      %p267 = pneg %p128
      %p268 = pneg %p125
      %p269 = pneg %p149
      %p270 = pneg %p146
      %p271 = pneg %p170
      %p272 = pneg %p167
      %p273 = pneg %p196
      %p274 = pneg %p193
      %p275 = scmp.lt.s32.totalorder %s18, 2
      %s276 = scalar_select %p275, %s18, 2
      %s277 = smul.addr %s276, 8
      %s278 = scalar_lea.vmem %s7, %s277
      %p279 = scmp.lt.s32.totalorder %s18, 2
      %s280 = scalar_select %p279, %s18, 2
      %s281 = smul.addr %s280, 4
      %s282 = scalar_lea.vmem %s0, %s281
      %p283 = scmp.lt.s32.totalorder %s18, 2
      %s284 = scalar_select %p283, %s18, 2
      %s285 = smul.addr %s284, 4
      %s286 = scalar_lea.vmem %s1, %s285
      %p287 = scmp.lt.s32.totalorder %s18, 2
      %s288 = scalar_select %p287, %s18, 2
      %s289 = smul.addr %s288, 8
      %s290 = scalar_lea.vmem %s7, %s289
      %v292 = vld [vmem:[%s282] sm:$0xf]
      %v293 = vld [vmem:[%s286] sm:$0xf]
      %v294 = vld [vmem:[%s2] sm:$0xf]
      %v295 = vld [vmem:[%s2 + $0x4] sm:$0xf]
      %v296 = vld [vmem:[%s4] sm:$0x1]
      %v298 = vlaneseq
      %v299 = vshrl.u32 %v298, 7
      %v300 = vsub.s32 0, %v299
      %v301 = vrot.slane %v296, %v300
      %v305 = vunpack.c.l.b16 %v294
      %v306 = vunpack.c.l.b16 %v295
      %v307 = vpack.c.b16 %v306, %v305
      %vm309 = vcmask 130048
      %v311 = vsel %vm309, %v292, 0
      %313 = vmatprep.subr.bf16.mxu0 0
      %314 = vmatpush1.bf16.msra.mxu0 %v307
      %315 = vmatprep.subr.bf16.mxu0 0
      %316 = vmatpush1.bf16.msra.mxu0 0
      %317 = vmatprep.subr.bf16.mxu0 0
      %318 = vmatpush1.bf16.msra.mxu0 0
      %319 = vmatprep.subr.bf16.mxu0 0
      %320 = vmatpush1.bf16.msra.mxu0 0
      %321 = vmatprep.subr.bf16.mxu0 0
      %322 = vmatpush1.bf16.msra.mxu0 0
      %323 = vmatprep.subr.bf16.mxu0 0
      %324 = vmatpush1.bf16.msra.mxu0 0
      %325 = vmatprep.subr.bf16.mxu0 0
      %326 = vmatpush1.bf16.msra.mxu0 0
      %327 = vmatprep.subr.bf16.mxu0 0
      %328 = vmatpush1.bf16.msra.mxu0 0
      %329 = vmatprep.subr.bf16.mxu0 0
      %330 = vmatpush1.bf16.msra.mxu0 0
      %331 = vmatprep.subr.bf16.mxu0 0
      %332 = vmatpush1.bf16.msra.mxu0 0
      %333 = vmatprep.subr.bf16.mxu0 0
      %334 = vmatpush1.bf16.msra.mxu0 0
      %335 = vmatprep.subr.bf16.mxu0 0
      %336 = vmatpush1.bf16.msra.mxu0 0
      %337 = vmatprep.subr.bf16.mxu0 0
      %338 = vmatpush1.bf16.msra.mxu0 0
      %339 = vmatprep.subr.bf16.mxu0 0
      %340 = vmatpush1.bf16.msra.mxu0 0
      %341 = vmatprep.subr.bf16.mxu0 0
      %342 = vmatpush1.bf16.msra.mxu0 0
      %343 = vmatprep.subr.bf16.mxu0 0
      %344 = vmatpush1.bf16.msra.mxu0 0
      %345 = vmatprep.mubr.bf16.mxu0 0
      %346 = vmatmul.mubr.bf16.gmra.mrb[0].mxu0 %v311
      %v347 = vpop.f32.mrb[0].mxu0
      %v348 = vadd.f32 %v301, %v347
      %v349 = vpop.f32.mrb[0].mxu0
      %v350 = vpop.f32.mrb[0].mxu0
      %v351 = vpop.f32.mrb[0].mxu0
      %352 = vdwg.mxu0
      %v353 = vld [vmem:[%s3] sm:$0xf]
      %v354 = vld [vmem:[%s3 + $0x4] sm:$0xf]
      %v355 = vld [vmem:[%s5] sm:$0x1]
      %v357 = vlaneseq
      %v358 = vshrl.u32 %v357, 7
      %v359 = vsub.s32 0, %v358
      %v360 = vrot.slane %v355, %v359
      %v364 = vunpack.c.l.b16 %v353
      %v365 = vunpack.c.l.b16 %v354
      %v366 = vpack.c.b16 %v365, %v364
      %v369 = vsel %vm309, %v293, 0
      %371 = vmatprep.subr.bf16.mxu0 0
      %372 = vmatpush1.bf16.msra.mxu0 %v366
      %373 = vmatprep.subr.bf16.mxu0 0
      %374 = vmatpush1.bf16.msra.mxu0 0
      %375 = vmatprep.subr.bf16.mxu0 0
      %376 = vmatpush1.bf16.msra.mxu0 0
      %377 = vmatprep.subr.bf16.mxu0 0
      %378 = vmatpush1.bf16.msra.mxu0 0
      %379 = vmatprep.subr.bf16.mxu0 0
      %380 = vmatpush1.bf16.msra.mxu0 0
      %381 = vmatprep.subr.bf16.mxu0 0
      %382 = vmatpush1.bf16.msra.mxu0 0
      %383 = vmatprep.subr.bf16.mxu0 0
      %384 = vmatpush1.bf16.msra.mxu0 0
      %385 = vmatprep.subr.bf16.mxu0 0
      %386 = vmatpush1.bf16.msra.mxu0 0
      %387 = vmatprep.subr.bf16.mxu0 0
      %388 = vmatpush1.bf16.msra.mxu0 0
      %389 = vmatprep.subr.bf16.mxu0 0
      %390 = vmatpush1.bf16.msra.mxu0 0
      %391 = vmatprep.subr.bf16.mxu0 0
      %392 = vmatpush1.bf16.msra.mxu0 0
      %393 = vmatprep.subr.bf16.mxu0 0
      %394 = vmatpush1.bf16.msra.mxu0 0
      %395 = vmatprep.subr.bf16.mxu0 0
      %396 = vmatpush1.bf16.msra.mxu0 0
      %397 = vmatprep.subr.bf16.mxu0 0
      %398 = vmatpush1.bf16.msra.mxu0 0
      %399 = vmatprep.subr.bf16.mxu0 0
      %400 = vmatpush1.bf16.msra.mxu0 0
      %401 = vmatprep.subr.bf16.mxu0 0
      %402 = vmatpush1.bf16.msra.mxu0 0
      %403 = vmatprep.mubr.bf16.mxu0 0
      %404 = vmatmul.mubr.bf16.gmra.mrb[0].mxu0 %v369
      %v405 = vpop.f32.mrb[0].mxu0
      %v406 = vadd.f32 %v360, %v405
      %v407 = vpop.f32.mrb[0].mxu0
      %v408 = vpop.f32.mrb[0].mxu0
      %v409 = vpop.f32.mrb[0].mxu0
      %410 = vdwg.mxu0
      %v411 = vmul.f32 %v348, %v406
      %v412 = vld [vmem:[%s6] sm:$0xff]
      %v413 = vld [vmem:[%s6 + $0x8] sm:$0xff]
      %v414 = vld [vmem:[%s6 + $0x10] sm:$0xff]
      %v415 = vld [vmem:[%s6 + $0x18] sm:$0xff]
      %vm416 = vcmask 261120
      %v418 = vsel %vm416, %v411, 0
      %420 = vmatprep.subr.mxu0 0.0
      %421 = vmatpush1.msra.mxu0 %v412
      %422 = vmatprep.subr.mxu0 0.0
      %423 = vmatpush1.msra.mxu0 %v413
      %424 = vmatprep.subr.mxu0 0.0
      %425 = vmatpush1.msra.mxu0 %v414
      %426 = vmatprep.subr.mxu0 0.0
      %427 = vmatpush1.msra.mxu0 %v415
      %428 = vmatprep.subr.mxu0 0.0
      %429 = vmatpush1.msra.mxu0 0.0
      %430 = vmatprep.subr.mxu0 0.0
      %431 = vmatpush1.msra.mxu0 0.0
      %432 = vmatprep.subr.mxu0 0.0
      %433 = vmatpush1.msra.mxu0 0.0
      %434 = vmatprep.subr.mxu0 0.0
      %435 = vmatpush1.msra.mxu0 0.0
      %436 = vmatprep.subr.mxu0 0.0
      %437 = vmatpush1.msra.mxu0 0.0
      %438 = vmatprep.subr.mxu0 0.0
      %439 = vmatpush1.msra.mxu0 0.0
      %440 = vmatprep.subr.mxu0 0.0
      %441 = vmatpush1.msra.mxu0 0.0
      %442 = vmatprep.subr.mxu0 0.0
      %443 = vmatpush1.msra.mxu0 0.0
      %444 = vmatprep.subr.mxu0 0.0
      %445 = vmatpush1.msra.mxu0 0.0
      %446 = vmatprep.subr.mxu0 0.0
      %447 = vmatpush1.msra.mxu0 0.0
      %448 = vmatprep.subr.mxu0 0.0
      %449 = vmatpush1.msra.mxu0 0.0
      %450 = vmatprep.subr.mxu0 0.0
      %451 = vmatpush1.msra.mxu0 0.0
      %452 = vmatprep.subr.mxu0 0.0
      %453 = vmatpush1.msra.mxu0 0.0
      %454 = vmatprep.subr.mxu0 0.0
      %455 = vmatpush1.msra.mxu0 0.0
      %456 = vmatprep.subr.mxu0 0.0
      %457 = vmatpush1.msra.mxu0 0.0
      %458 = vmatprep.subr.mxu0 0.0
      %459 = vmatpush1.msra.mxu0 0.0
      %460 = vmatprep.subr.mxu0 0.0
      %461 = vmatpush1.msra.mxu0 0.0
      %462 = vmatprep.subr.mxu0 0.0
      %463 = vmatpush1.msra.mxu0 0.0
      %464 = vmatprep.subr.mxu0 0.0
      %465 = vmatpush1.msra.mxu0 0.0
      %466 = vmatprep.subr.mxu0 0.0
      %467 = vmatpush1.msra.mxu0 0.0
      %468 = vmatprep.subr.mxu0 0.0
      %469 = vmatpush1.msra.mxu0 0.0
      %470 = vmatprep.subr.mxu0 0.0
      %471 = vmatpush1.msra.mxu0 0.0
      %472 = vmatprep.subr.mxu0 0.0
      %473 = vmatpush1.msra.mxu0 0.0
      %474 = vmatprep.subr.mxu0 0.0
      %475 = vmatpush1.msra.mxu0 0.0
      %476 = vmatprep.subr.mxu0 0.0
      %477 = vmatpush1.msra.mxu0 0.0
      %478 = vmatprep.subr.mxu0 0.0
      %479 = vmatpush1.msra.mxu0 0.0
      %480 = vmatprep.subr.mxu0 0.0
      %481 = vmatpush1.msra.mxu0 0.0
      %482 = vmatprep.subr.mxu0 0.0
      %483 = vmatpush1.msra.mxu0 0.0
      %484 = vmatprep.mubr.f32.mxu0 0.0
      %485 = vmatmul.mubr.f32.gmra.mrb[0].mxu0 %v418
      %v486 = vpop.f32.mrb[0].mxu0
      %v487 = vadd.f32 0.0, %v486
      %v488 = vpop.f32.mrb[0].mxu0
      %489 = vdwg.mxu0
      %v490 = vsub.f32 %v487, %v487
      %v491 = vmul.f32 %v490, 1.442695
      %v492 = vpow.pop %v491
      %494 = vrot.lane.b32.xlu0 %v406, 96
      %v495 = vpop.permute.xlu0 %494
      %v497 = vmul.f32 %v492, %v495
      %498 = vst.msk [vmem:[%s290] sm:$0xff] %vm416, %v497
      %p499 = scmp.lt.s32.totalorder %s18, 2
      %s500 = scalar_select %p499, %s18, 2
      %s501 = smul.addr %s500, 8
      %s502 = scalar_lea.vmem %s7, %s501
      // Predicated region
      $region49: #{multi_head_attention.1} parent=47 // pred_check
        %p503 = pneg %p193
      $region50: #{multi_head_attention.1} parent=47 // pred_check_branch
        %505 = sbr.rel (%p503) target = $region52
      $region51: #{multi_head_attention.1} parent=47 // pred_region
        _
      $region52: #{multi_head_attention.1} parent=47 // pred_fallthru
        _
    $region48: #{multi_head_attention.1} parent=5 // pred_fallthru
      _
    %p506 = scmp.le.s32.totalorder 2, %s13
    // Predicated region
    $region53: #{multi_head_attention.1} parent=5 // pred_check
      %p507 = pneg %p506
    $region54: #{multi_head_attention.1} parent=5 // pred_check_branch
      %509 = sbr.rel (%p507) target = $region56
    $region55: #{multi_head_attention.1} parent=5 // pred_region
      %s510 = ssub.s32 %s13, 2
      // Predicated region
      $region57: #{multi_head_attention.1} parent=55 // pred_check
        %p511 = pneg %p199
      $region58: #{multi_head_attention.1} parent=55 // pred_check_branch
        %513 = sbr.rel (%p511) target = $region60
      $region59: #{multi_head_attention.1} parent=55 // pred_region
        %p514 = scmp.lt.s32.totalorder %s19, 2
        %s515 = scalar_select %p514, %s19, 2
        %s516 = smul.addr %s515, 8
        %s517 = scalar_lea.vmem %s7, %s516
      $region60: #{multi_head_attention.1} parent=55 // pred_fallthru
        _
    $region56: #{multi_head_attention.1} parent=5 // pred_fallthru
      _
  $region6: #{multi_head_attention.1} parent=0 // loop_footer
    %s17 = sadd.s32 1, %s13
  $region7: #{multi_head_attention.1} parent=0 // loop_footer_branch
    %12 = sbr.rel target = $region3
  $region8: #{multi_head_attention.1} parent=0 // loop_exit
    _

</llo_original>
